<compile_context>
chip_gen: v7x
topology: tpu7x:2x2x1
jax: 0.10.0
libtpu: 0.0.40
codegen_flags: <defaults>
</compile_context>

<pallas_src>
import functools

import jax
import jax.numpy as jnp
from jax.experimental import pallas as pl
from jax.experimental.pallas import tpu as pltpu


def _head_transform_kernel(x_ref, w_ref, b_ref, gamma_ref, beta_ref, o_ref, *,
                           eps, n_sub, sub_m):
    # x_ref: (TM, H) bf16, w_ref: (H, H) bf16 (in x out),
    # b_ref/gamma_ref/beta_ref: (1, H) f32, o_ref: (TM, H) output dtype.
    w = w_ref[...]
    b = b_ref[...]
    g = gamma_ref[...]
    be = beta_ref[...]

    # Static (unrolled) sub-block loop: one basic block, so the MXU push for
    # sub-block k+1 co-issues with the LN epilogue of sub-block k.
    for k in range(n_sub):
        rows = pl.ds(k * sub_m, sub_m)

        # Dense: bf16 operands straight to the MXU, f32 accumulator.
        h = jnp.dot(x_ref[rows, :], w, preferred_element_type=jnp.float32)
        h = h + b

        # Activation: config.hidden_act is a str in the reference module -> relu.
        h = jnp.maximum(h, 0.0)

        # BertLayerNorm (TF style: eps inside the sqrt), biased variance over
        # the last axis.  Single-pass statistics: var = E[h^2] - E[h]^2.
        u = jnp.mean(h, axis=-1, keepdims=True)
        q = jnp.mean(h * h, axis=-1, keepdims=True)
        var = jnp.maximum(q - u * u, 0.0)
        out = (h - u) * jax.lax.rsqrt(var + eps)     # rsqrt -> EUP slot
        out = g * out + be

        o_ref[rows, :] = out.astype(o_ref.dtype)


def _round_up(x, m):
    return (x + m - 1) // m * m


def bert_prediction_head_transform(x, w, b, gamma, beta, *, eps=1e-12,
                                   tile_m=1024, mxu_dtype=jnp.bfloat16):
    """x: (T, H) tokens-major; w: (H_in, H_out) pre-transposed Linear weight."""
    T, H = x.shape
    assert w.shape == (H, H)
    out_dtype = x.dtype

    # MXU operands: cast once here (bf16 by default); accumulation stays f32.
    x_mxu = x.astype(mxu_dtype)
    w_mxu = w.astype(mxu_dtype)

    # Small (1, H) params: cast to f32 once (hoisted out of the kernel body).
    b2 = b.reshape(1, H).astype(jnp.float32)
    g2 = gamma.reshape(1, H).astype(jnp.float32)
    be2 = beta.reshape(1, H).astype(jnp.float32)

    # ---- Row-tile selection --------------------------------------------------
    tile_m_eff = min(int(tile_m), _round_up(T, 8))
    tile_m_eff = max(8, _round_up(tile_m_eff, 8))
    # Keep >= 2 grid steps on larger inputs so the "parallel" row axis can be
    # split across v7x's two TensorCores instead of collapsing to one step.
    if pl.cdiv(T, tile_m_eff) < 2 and T >= 512:
        tile_m_eff = max(8, _round_up(pl.cdiv(T, 2), 8))

    # ---- VMEM budgeting (hardware-derived cap; v7x only has 64 MiB per TC) ---
    try:
        vmem_cap = pltpu.get_tpu_info().vmem_capacity_bytes
    except Exception:
        vmem_cap = 64 * 1024 * 1024  # conservative: v7x per-TC capacity
    vmem_budget = int(0.85 * vmem_cap)

    def _n_sub(tm):
        for n in (4, 2, 1):
            if tm % (8 * n) == 0:
                return n
        return 1

    in_itemsize = jnp.dtype(mxu_dtype).itemsize
    out_itemsize = jnp.dtype(out_dtype).itemsize

    def _estimate(tm):
        n = _n_sub(tm)
        w_bytes = H * H * in_itemsize            # weight copy (x2 below for safety
        x_bytes = 2 * tm * H * in_itemsize       # x tile, double-buffered
        o_bytes = 2 * tm * H * out_itemsize      # out tile, double-buffered
        f32_scratch = 3 * (tm // n) * H * 4      # live f32 LN intermediates / sub-block
        return 2 * w_bytes + x_bytes + o_bytes + f32_scratch + 3 * H * 4 + (1 << 20)

    # Shrink the row tile until the estimate fits the hardware budget.
    while _estimate(tile_m_eff) > vmem_budget and tile_m_eff > 8:
        tile_m_eff = max(8, _round_up(tile_m_eff // 2, 8))

    n_sub = _n_sub(tile_m_eff)
    sub_m = tile_m_eff // n_sub

    vmem_limit = min(max(int(1.5 * _estimate(tile_m_eff)), 32 * 1024 * 1024),
                     vmem_budget)

    grid = (pl.cdiv(T, tile_m_eff),)
    kernel = functools.partial(_head_transform_kernel, eps=eps,
                               n_sub=n_sub, sub_m=sub_m)

    def _call(single_buffer_invariants):
        inv_kwargs = ({"pipeline_mode": pl.Buffered(1)}
                      if single_buffer_invariants else {})
        return pl.pallas_call(
            kernel,
            out_shape=jax.ShapeDtypeStruct((T, H), out_dtype),
            grid_spec=pltpu.PrefetchScalarGridSpec(
                num_scalar_prefetch=0,
                grid=grid,
                in_specs=[
                    pl.BlockSpec((tile_m_eff, H), lambda i: (i, 0)),           # x tile
                    pl.BlockSpec((H, H), lambda i: (0, 0), **inv_kwargs),      # weight
                    pl.BlockSpec((1, H), lambda i: (0, 0), **inv_kwargs),      # dense bias
                    pl.BlockSpec((1, H), lambda i: (0, 0), **inv_kwargs),      # LN gamma
                    pl.BlockSpec((1, H), lambda i: (0, 0), **inv_kwargs),      # LN beta
                ],
                out_specs=pl.BlockSpec((tile_m_eff, H), lambda i: (i, 0)),
            ),
            compiler_params=pltpu.CompilerParams(
                dimension_semantics=("parallel",),
                vmem_limit_bytes=vmem_limit,
            ),
        )(x_mxu, w_mxu, b2, g2, be2)

    try:
        return _call(True)
    except Exception:
        # TODO(synk): drop this fallback once pl.Buffered(1) single-buffering of
        # grid-invariant operands is verified on all deployed Pallas versions.
        return _call(False)


def _reference(x, w, b, gamma, beta, eps=1e-12):
    h = x.astype(jnp.float32) @ w.astype(jnp.float32) + b.astype(jnp.float32)
    h = jnp.maximum(h, 0.0)
    u = jnp.mean(h, axis=-1, keepdims=True)
    s = jnp.mean((h - u) ** 2, axis=-1, keepdims=True)
    h = (h - u) / jnp.sqrt(s + eps)
    return gamma.astype(jnp.float32) * h + beta.astype(jnp.float32)


if __name__ == "__main__":
    batch, seq, hidden = 2, 8, 32
    key = jax.random.PRNGKey(0)
    kx, kw, kb = jax.random.split(key, 3)

    # Module input: (batch, seq, hidden); flatten to (tokens, hidden) for the kernel.
    x3 = jax.random.normal(kx, (batch, seq, hidden), dtype=jnp.float32)
    x = x3.reshape(batch * seq, hidden)

    # Deterministic parameter init (Linear weight stored PyTorch-style (out, in)).
    w_pt = jax.random.normal(kw, (hidden, hidden), dtype=jnp.float32) * 0.02
    b = jax.random.normal(kb, (hidden,), dtype=jnp.float32) * 0.02
    gamma = jnp.ones((hidden,), dtype=jnp.float32)   # BertLayerNorm.weight
    beta = jnp.zeros((hidden,), dtype=jnp.float32)   # BertLayerNorm.bias

    w = w_pt.T  # (in, out) for x @ w

    out = bert_prediction_head_transform(x, w, b, gamma, beta)
    out = jax.block_until_ready(out)

    ref = _reference(x, w, b, gamma, beta)
    assert out.shape == (batch * seq, hidden)
    # bf16 MXU operands (intentional, per perf review) -> relaxed tolerance.
    assert jnp.allclose(out.astype(jnp.float32), ref, atol=5e-2, rtol=5e-2), \
        "mismatch vs reference"

    # Reshape back to (batch, seq, hidden) to match the module's output shape.
    out3 = out.reshape(batch, seq, hidden)
    jax.block_until_ready(out3)
    print("KERNEL_OK")
</pallas_src>

<mosaic_0001>
module attributes {stable_mosaic.version = 11 : i64} {
  func.func @_head_transform_kernel(%arg0: i32, %arg1: memref<16x32xbf16, #tpu.memory_space<vmem>>, %arg2: memref<32x32xbf16, #tpu.memory_space<vmem>>, %arg3: memref<1x32xf32, #tpu.memory_space<vmem>>, %arg4: memref<1x32xf32, #tpu.memory_space<vmem>>, %arg5: memref<1x32xf32, #tpu.memory_space<vmem>>, %arg6: memref<16x32xf32, #tpu.memory_space<vmem>>) attributes {dimension_semantics = [#tpu.dimension_semantics<parallel>], iteration_bounds = array<i64: 1>, scalar_prefetch = 0 : i64, scratch_operands = 0 : i64, tpu.core_type = #tpu.core_type<tc>, window_params = [{transform_indices = @transform_0, window_bounds = array<i64: 16, 32>}, {pipeline_mode = #tpu.pipeline_mode<synchronous>, transform_indices = @transform_1, window_bounds = array<i64: 32, 32>}, {pipeline_mode = #tpu.pipeline_mode<synchronous>, transform_indices = @transform_2, window_bounds = array<i64: 1, 32>}, {pipeline_mode = #tpu.pipeline_mode<synchronous>, transform_indices = @transform_3, window_bounds = array<i64: 1, 32>}, {pipeline_mode = #tpu.pipeline_mode<synchronous>, transform_indices = @transform_4, window_bounds = array<i64: 1, 32>}, {transform_indices = @transform_5, window_bounds = array<i64: 16, 32>}]} {
    %c0 = arith.constant 0 : index
    %c0_0 = arith.constant 0 : index
    %0 = vector.load %arg2[%c0, %c0_0] : memref<32x32xbf16, #tpu.memory_space<vmem>>, vector<32x32xbf16>
    %c0_1 = arith.constant 0 : index
    %c0_2 = arith.constant 0 : index
    %1 = vector.load %arg3[%c0_1, %c0_2] : memref<1x32xf32, #tpu.memory_space<vmem>>, vector<1x32xf32>
    %c0_3 = arith.constant 0 : index
    %c0_4 = arith.constant 0 : index
    %2 = vector.load %arg4[%c0_3, %c0_4] : memref<1x32xf32, #tpu.memory_space<vmem>>, vector<1x32xf32>
    %c0_5 = arith.constant 0 : index
    %c0_6 = arith.constant 0 : index
    %3 = vector.load %arg5[%c0_5, %c0_6] : memref<1x32xf32, #tpu.memory_space<vmem>>, vector<1x32xf32>
    %c0_7 = arith.constant 0 : index
    %c0_8 = arith.constant 0 : index
    %4 = vector.load %arg1[%c0_7, %c0_8] : memref<16x32xbf16, #tpu.memory_space<vmem>>, vector<8x32xbf16>
    %cst = arith.constant dense<0.000000e+00> : vector<8x32xf32>
    %5 = tpu.matmul %4, %0, %cst {dimension_numbers = #tpu.dot_dimension_numbers<[1], [0], [0], [1], [0, 0, 1, 1], [], []>} : vector<8x32xbf16>, vector<32x32xbf16>, vector<8x32xf32> -> vector<8x32xf32>
    %6 = vector.broadcast %1 : vector<1x32xf32> to vector<8x32xf32>
    %7 = arith.addf %5, %6 : vector<8x32xf32>
    %cst_9 = arith.constant 0.000000e+00 : f32
    %8 = vector.broadcast %cst_9 : f32 to vector<8x32xf32>
    %9 = arith.maximumf %7, %8 : vector<8x32xf32>
    %cst_10 = arith.constant dense<0.000000e+00> : vector<8xf32>
    %10 = vector.multi_reduction <add>, %9, %cst_10 [1] : vector<8x32xf32> to vector<8xf32>
    %11 = vector.shape_cast %10 : vector<8xf32> to vector<8x1xf32>
    %cst_11 = arith.constant 3.200000e+01 : f32
    %12 = vector.broadcast %cst_11 : f32 to vector<8x1xf32>
    %13 = arith.divf %11, %12 : vector<8x1xf32>
    %14 = arith.mulf %9, %9 : vector<8x32xf32>
    %cst_12 = arith.constant dense<0.000000e+00> : vector<8xf32>
    %15 = vector.multi_reduction <add>, %14, %cst_12 [1] : vector<8x32xf32> to vector<8xf32>
    %16 = vector.shape_cast %15 : vector<8xf32> to vector<8x1xf32>
    %cst_13 = arith.constant 3.200000e+01 : f32
    %17 = vector.broadcast %cst_13 : f32 to vector<8x1xf32>
    %18 = arith.divf %16, %17 : vector<8x1xf32>
    %19 = arith.mulf %13, %13 : vector<8x1xf32>
    %20 = arith.subf %18, %19 : vector<8x1xf32>
    %cst_14 = arith.constant 0.000000e+00 : f32
    %21 = vector.broadcast %cst_14 : f32 to vector<8x1xf32>
    %22 = arith.maximumf %20, %21 : vector<8x1xf32>
    %23 = vector.broadcast %13 : vector<8x1xf32> to vector<8x32xf32>
    %24 = arith.subf %9, %23 : vector<8x32xf32>
    %cst_15 = arith.constant 9.99999996E-13 : f32
    %25 = vector.broadcast %cst_15 : f32 to vector<8x1xf32>
    %26 = arith.addf %22, %25 : vector<8x1xf32>
    %27 = math.rsqrt %26 : vector<8x1xf32>
    %28 = vector.broadcast %27 : vector<8x1xf32> to vector<8x32xf32>
    %29 = arith.mulf %24, %28 : vector<8x32xf32>
    %30 = vector.broadcast %2 : vector<1x32xf32> to vector<8x32xf32>
    %31 = arith.mulf %30, %29 : vector<8x32xf32>
    %32 = vector.broadcast %3 : vector<1x32xf32> to vector<8x32xf32>
    %33 = arith.addf %31, %32 : vector<8x32xf32>
    %c0_16 = arith.constant 0 : index
    %c0_17 = arith.constant 0 : index
    %34 = vector.load %arg6[%c0_16, %c0_17] : memref<16x32xf32, #tpu.memory_space<vmem>>, vector<8x32xf32>
    tpu.vector_store %arg6[%c0_16, %c0_17], %33 {strides = array<i32>} : memref<16x32xf32, #tpu.memory_space<vmem>>, vector<8x32xf32>,
    %c8 = arith.constant 8 : index
    %c0_18 = arith.constant 0 : index
    %35 = vector.load %arg1[%c8, %c0_18] : memref<16x32xbf16, #tpu.memory_space<vmem>>, vector<8x32xbf16>
    %cst_19 = arith.constant dense<0.000000e+00> : vector<8x32xf32>
    %36 = tpu.matmul %35, %0, %cst_19 {dimension_numbers = #tpu.dot_dimension_numbers<[1], [0], [0], [1], [0, 0, 1, 1], [], []>} : vector<8x32xbf16>, vector<32x32xbf16>, vector<8x32xf32> -> vector<8x32xf32>
    %37 = vector.broadcast %1 : vector<1x32xf32> to vector<8x32xf32>
    %38 = arith.addf %36, %37 : vector<8x32xf32>
    %cst_20 = arith.constant 0.000000e+00 : f32
    %39 = vector.broadcast %cst_20 : f32 to vector<8x32xf32>
    %40 = arith.maximumf %38, %39 : vector<8x32xf32>
    %cst_21 = arith.constant dense<0.000000e+00> : vector<8xf32>
    %41 = vector.multi_reduction <add>, %40, %cst_21 [1] : vector<8x32xf32> to vector<8xf32>
    %42 = vector.shape_cast %41 : vector<8xf32> to vector<8x1xf32>
    %cst_22 = arith.constant 3.200000e+01 : f32
    %43 = vector.broadcast %cst_22 : f32 to vector<8x1xf32>
    %44 = arith.divf %42, %43 : vector<8x1xf32>
    %45 = arith.mulf %40, %40 : vector<8x32xf32>
    %cst_23 = arith.constant dense<0.000000e+00> : vector<8xf32>
    %46 = vector.multi_reduction <add>, %45, %cst_23 [1] : vector<8x32xf32> to vector<8xf32>
    %47 = vector.shape_cast %46 : vector<8xf32> to vector<8x1xf32>
    %cst_24 = arith.constant 3.200000e+01 : f32
    %48 = vector.broadcast %cst_24 : f32 to vector<8x1xf32>
    %49 = arith.divf %47, %48 : vector<8x1xf32>
    %50 = arith.mulf %44, %44 : vector<8x1xf32>
    %51 = arith.subf %49, %50 : vector<8x1xf32>
    %cst_25 = arith.constant 0.000000e+00 : f32
    %52 = vector.broadcast %cst_25 : f32 to vector<8x1xf32>
    %53 = arith.maximumf %51, %52 : vector<8x1xf32>
    %54 = vector.broadcast %44 : vector<8x1xf32> to vector<8x32xf32>
    %55 = arith.subf %40, %54 : vector<8x32xf32>
    %cst_26 = arith.constant 9.99999996E-13 : f32
    %56 = vector.broadcast %cst_26 : f32 to vector<8x1xf32>
    %57 = arith.addf %53, %56 : vector<8x1xf32>
    %58 = math.rsqrt %57 : vector<8x1xf32>
    %59 = vector.broadcast %58 : vector<8x1xf32> to vector<8x32xf32>
    %60 = arith.mulf %55, %59 : vector<8x32xf32>
    %61 = vector.broadcast %2 : vector<1x32xf32> to vector<8x32xf32>
    %62 = arith.mulf %61, %60 : vector<8x32xf32>
    %63 = vector.broadcast %3 : vector<1x32xf32> to vector<8x32xf32>
    %64 = arith.addf %62, %63 : vector<8x32xf32>
    %c8_27 = arith.constant 8 : index
    %c0_28 = arith.constant 0 : index
    %65 = vector.load %arg6[%c8_27, %c0_28] : memref<16x32xf32, #tpu.memory_space<vmem>>, vector<8x32xf32>
    tpu.vector_store %arg6[%c8_27, %c0_28], %64 {strides = array<i32>} : memref<16x32xf32, #tpu.memory_space<vmem>>, vector<8x32xf32>,
    return
  }
  func.func @transform_0(%arg0: i32) -> (i32, i32) {
    %c0_i32 = arith.constant 0 : i32
    %c0_i32_0 = arith.constant 0 : i32
    return %arg0, %c0_i32 : i32, i32
  }
  func.func @transform_1(%arg0: i32) -> (i32, i32) {
    %c0_i32 = arith.constant 0 : i32
    %c0_i32_0 = arith.constant 0 : i32
    %c0_i32_1 = arith.constant 0 : i32
    return %c0_i32, %c0_i32_0 : i32, i32
  }
  func.func @transform_2(%arg0: i32) -> (i32, i32) {
    %c0_i32 = arith.constant 0 : i32
    %c0_i32_0 = arith.constant 0 : i32
    %c0_i32_1 = arith.constant 0 : i32
    return %c0_i32, %c0_i32_0 : i32, i32
  }
  func.func @transform_3(%arg0: i32) -> (i32, i32) {
    %c0_i32 = arith.constant 0 : i32
    %c0_i32_0 = arith.constant 0 : i32
    %c0_i32_1 = arith.constant 0 : i32
    return %c0_i32, %c0_i32_0 : i32, i32
  }
  func.func @transform_4(%arg0: i32) -> (i32, i32) {
    %c0_i32 = arith.constant 0 : i32
    %c0_i32_0 = arith.constant 0 : i32
    %c0_i32_1 = arith.constant 0 : i32
    return %c0_i32, %c0_i32_0 : i32, i32
  }
  func.func @transform_5(%arg0: i32) -> (i32, i32) {
    %c0_i32 = arith.constant 0 : i32
    %c0_i32_0 = arith.constant 0 : i32
    return %arg0, %c0_i32 : i32, i32
  }
}

module attributes {stable_mosaic.version = 11 : i64} {
  func.func @_head_transform_kernel(%arg0: i32, %arg1: memref<16x32xbf16, #tpu.memory_space<vmem>>, %arg2: memref<32x32xbf16, #tpu.memory_space<vmem>>, %arg3: memref<1x32xf32, #tpu.memory_space<vmem>>, %arg4: memref<1x32xf32, #tpu.memory_space<vmem>>, %arg5: memref<1x32xf32, #tpu.memory_space<vmem>>, %arg6: memref<16x32xf32, #tpu.memory_space<vmem>>) attributes {dimension_semantics = [#tpu.dimension_semantics<parallel>], iteration_bounds = array<i64: 1>, scalar_prefetch = 0 : i64, scratch_operands = 0 : i64, tpu.core_type = #tpu.core_type<tc>, window_params = [{transform_indices = @transform_0, window_bounds = array<i64: 16, 32>}, {pipeline_mode = #tpu.pipeline_mode<synchronous>, transform_indices = @transform_1, window_bounds = array<i64: 32, 32>}, {pipeline_mode = #tpu.pipeline_mode<synchronous>, transform_indices = @transform_2, window_bounds = array<i64: 1, 32>}, {pipeline_mode = #tpu.pipeline_mode<synchronous>, transform_indices = @transform_3, window_bounds = array<i64: 1, 32>}, {pipeline_mode = #tpu.pipeline_mode<synchronous>, transform_indices = @transform_4, window_bounds = array<i64: 1, 32>}, {transform_indices = @transform_5, window_bounds = array<i64: 16, 32>}]} {
    %c0 = arith.constant 0 : index
    %c0_0 = arith.constant 0 : index
    %0 = vector.load %arg2[%c0, %c0_0] : memref<32x32xbf16, #tpu.memory_space<vmem>>, vector<32x32xbf16>
    %c0_1 = arith.constant 0 : index
    %c0_2 = arith.constant 0 : index
    %1 = vector.load %arg3[%c0_1, %c0_2] : memref<1x32xf32, #tpu.memory_space<vmem>>, vector<1x32xf32>
    %c0_3 = arith.constant 0 : index
    %c0_4 = arith.constant 0 : index
    %2 = vector.load %arg4[%c0_3, %c0_4] : memref<1x32xf32, #tpu.memory_space<vmem>>, vector<1x32xf32>
    %c0_5 = arith.constant 0 : index
    %c0_6 = arith.constant 0 : index
    %3 = vector.load %arg5[%c0_5, %c0_6] : memref<1x32xf32, #tpu.memory_space<vmem>>, vector<1x32xf32>
    %c0_7 = arith.constant 0 : index
    %c0_8 = arith.constant 0 : index
    %4 = vector.load %arg1[%c0_7, %c0_8] : memref<16x32xbf16, #tpu.memory_space<vmem>>, vector<8x32xbf16>
    %cst = arith.constant dense<0.000000e+00> : vector<8x32xf32>
    %5 = tpu.matmul %4, %0, %cst {dimension_numbers = #tpu.dot_dimension_numbers<[1], [0], [0], [1], [0, 0, 1, 1], [], []>} : vector<8x32xbf16>, vector<32x32xbf16>, vector<8x32xf32> -> vector<8x32xf32>
    %6 = vector.broadcast %1 : vector<1x32xf32> to vector<8x32xf32>
    %7 = arith.addf %5, %6 : vector<8x32xf32>
    %cst_9 = arith.constant 0.000000e+00 : f32
    %8 = vector.broadcast %cst_9 : f32 to vector<8x32xf32>
    %9 = arith.maximumf %7, %8 : vector<8x32xf32>
    %cst_10 = arith.constant dense<0.000000e+00> : vector<8xf32>
    %10 = vector.multi_reduction <add>, %9, %cst_10 [1] : vector<8x32xf32> to vector<8xf32>
    %11 = vector.shape_cast %10 : vector<8xf32> to vector<8x1xf32>
    %cst_11 = arith.constant 3.200000e+01 : f32
    %12 = vector.broadcast %cst_11 : f32 to vector<8x1xf32>
    %13 = arith.divf %11, %12 : vector<8x1xf32>
    %14 = arith.mulf %9, %9 : vector<8x32xf32>
    %cst_12 = arith.constant dense<0.000000e+00> : vector<8xf32>
    %15 = vector.multi_reduction <add>, %14, %cst_12 [1] : vector<8x32xf32> to vector<8xf32>
    %16 = vector.shape_cast %15 : vector<8xf32> to vector<8x1xf32>
    %cst_13 = arith.constant 3.200000e+01 : f32
    %17 = vector.broadcast %cst_13 : f32 to vector<8x1xf32>
    %18 = arith.divf %16, %17 : vector<8x1xf32>
    %19 = arith.mulf %13, %13 : vector<8x1xf32>
    %20 = arith.subf %18, %19 : vector<8x1xf32>
    %cst_14 = arith.constant 0.000000e+00 : f32
    %21 = vector.broadcast %cst_14 : f32 to vector<8x1xf32>
    %22 = arith.maximumf %20, %21 : vector<8x1xf32>
    %23 = vector.broadcast %13 : vector<8x1xf32> to vector<8x32xf32>
    %24 = arith.subf %9, %23 : vector<8x32xf32>
    %cst_15 = arith.constant 9.99999996E-13 : f32
    %25 = vector.broadcast %cst_15 : f32 to vector<8x1xf32>
    %26 = arith.addf %22, %25 : vector<8x1xf32>
    %27 = math.rsqrt %26 : vector<8x1xf32>
    %28 = vector.broadcast %27 : vector<8x1xf32> to vector<8x32xf32>
    %29 = arith.mulf %24, %28 : vector<8x32xf32>
    %30 = vector.broadcast %2 : vector<1x32xf32> to vector<8x32xf32>
    %31 = arith.mulf %30, %29 : vector<8x32xf32>
    %32 = vector.broadcast %3 : vector<1x32xf32> to vector<8x32xf32>
    %33 = arith.addf %31, %32 : vector<8x32xf32>
    %c0_16 = arith.constant 0 : index
    %c0_17 = arith.constant 0 : index
    %34 = vector.load %arg6[%c0_16, %c0_17] : memref<16x32xf32, #tpu.memory_space<vmem>>, vector<8x32xf32>
    tpu.vector_store %arg6[%c0_16, %c0_17], %33 {strides = array<i32>} : memref<16x32xf32, #tpu.memory_space<vmem>>, vector<8x32xf32>,
    %c8 = arith.constant 8 : index
    %c0_18 = arith.constant 0 : index
    %35 = vector.load %arg1[%c8, %c0_18] : memref<16x32xbf16, #tpu.memory_space<vmem>>, vector<8x32xbf16>
    %cst_19 = arith.constant dense<0.000000e+00> : vector<8x32xf32>
    %36 = tpu.matmul %35, %0, %cst_19 {dimension_numbers = #tpu.dot_dimension_numbers<[1], [0], [0], [1], [0, 0, 1, 1], [], []>} : vector<8x32xbf16>, vector<32x32xbf16>, vector<8x32xf32> -> vector<8x32xf32>
    %37 = vector.broadcast %1 : vector<1x32xf32> to vector<8x32xf32>
    %38 = arith.addf %36, %37 : vector<8x32xf32>
    %cst_20 = arith.constant 0.000000e+00 : f32
    %39 = vector.broadcast %cst_20 : f32 to vector<8x32xf32>
    %40 = arith.maximumf %38, %39 : vector<8x32xf32>
    %cst_21 = arith.constant dense<0.000000e+00> : vector<8xf32>
    %41 = vector.multi_reduction <add>, %40, %cst_21 [1] : vector<8x32xf32> to vector<8xf32>
    %42 = vector.shape_cast %41 : vector<8xf32> to vector<8x1xf32>
    %cst_22 = arith.constant 3.200000e+01 : f32
    %43 = vector.broadcast %cst_22 : f32 to vector<8x1xf32>
    %44 = arith.divf %42, %43 : vector<8x1xf32>
    %45 = arith.mulf %40, %40 : vector<8x32xf32>
    %cst_23 = arith.constant dense<0.000000e+00> : vector<8xf32>
    %46 = vector.multi_reduction <add>, %45, %cst_23 [1] : vector<8x32xf32> to vector<8xf32>
    %47 = vector.shape_cast %46 : vector<8xf32> to vector<8x1xf32>
    %cst_24 = arith.constant 3.200000e+01 : f32
    %48 = vector.broadcast %cst_24 : f32 to vector<8x1xf32>
    %49 = arith.divf %47, %48 : vector<8x1xf32>
    %50 = arith.mulf %44, %44 : vector<8x1xf32>
    %51 = arith.subf %49, %50 : vector<8x1xf32>
    %cst_25 = arith.constant 0.000000e+00 : f32
    %52 = vector.broadcast %cst_25 : f32 to vector<8x1xf32>
    %53 = arith.maximumf %51, %52 : vector<8x1xf32>
    %54 = vector.broadcast %44 : vector<8x1xf32> to vector<8x32xf32>
    %55 = arith.subf %40, %54 : vector<8x32xf32>
    %cst_26 = arith.constant 9.99999996E-13 : f32
    %56 = vector.broadcast %cst_26 : f32 to vector<8x1xf32>
    %57 = arith.addf %53, %56 : vector<8x1xf32>
    %58 = math.rsqrt %57 : vector<8x1xf32>
    %59 = vector.broadcast %58 : vector<8x1xf32> to vector<8x32xf32>
    %60 = arith.mulf %55, %59 : vector<8x32xf32>
    %61 = vector.broadcast %2 : vector<1x32xf32> to vector<8x32xf32>
    %62 = arith.mulf %61, %60 : vector<8x32xf32>
    %63 = vector.broadcast %3 : vector<1x32xf32> to vector<8x32xf32>
    %64 = arith.addf %62, %63 : vector<8x32xf32>
    %c8_27 = arith.constant 8 : index
    %c0_28 = arith.constant 0 : index
    %65 = vector.load %arg6[%c8_27, %c0_28] : memref<16x32xf32, #tpu.memory_space<vmem>>, vector<8x32xf32>
    tpu.vector_store %arg6[%c8_27, %c0_28], %64 {strides = array<i32>} : memref<16x32xf32, #tpu.memory_space<vmem>>, vector<8x32xf32>,
    return
  }
  func.func @transform_0(%arg0: i32) -> (i32, i32) {
    %c0_i32 = arith.constant 0 : i32
    %c0_i32_0 = arith.constant 0 : i32
    return %arg0, %c0_i32 : i32, i32
  }
  func.func @transform_1(%arg0: i32) -> (i32, i32) {
    %c0_i32 = arith.constant 0 : i32
    %c0_i32_0 = arith.constant 0 : i32
    %c0_i32_1 = arith.constant 0 : i32
    return %c0_i32, %c0_i32_0 : i32, i32
  }
  func.func @transform_2(%arg0: i32) -> (i32, i32) {
    %c0_i32 = arith.constant 0 : i32
    %c0_i32_0 = arith.constant 0 : i32
    %c0_i32_1 = arith.constant 0 : i32
    return %c0_i32, %c0_i32_0 : i32, i32
  }
  func.func @transform_3(%arg0: i32) -> (i32, i32) {
    %c0_i32 = arith.constant 0 : i32
    %c0_i32_0 = arith.constant 0 : i32
    %c0_i32_1 = arith.constant 0 : i32
    return %c0_i32, %c0_i32_0 : i32, i32
  }
  func.func @transform_4(%arg0: i32) -> (i32, i32) {
    %c0_i32 = arith.constant 0 : i32
    %c0_i32_0 = arith.constant 0 : i32
    %c0_i32_1 = arith.constant 0 : i32
    return %c0_i32, %c0_i32_0 : i32, i32
  }
  func.func @transform_5(%arg0: i32) -> (i32, i32) {
    %c0_i32 = arith.constant 0 : i32
    %c0_i32_0 = arith.constant 0 : i32
    return %arg0, %c0_i32 : i32, i32
  }
}

</mosaic_0001>

<llo_original>
// kernel: tpu_custom_call.1
$region0: #{tpu_custom_call.1}
  #allocation0 [shape = 'u32[]', space=smem, size = 0x4, offset = 0x4, fixed_abs, tag = 'smem constant byte address 0x4 - core index']
  #allocation1 [shape = 'u32[144,128]{1,0:T(1,128)}', space=vmem, size = 0x12000, scoped, tag = 'internal scratch']
  %s0 = inlined_call_operand.hbm [shape: bf16[16,32], index: 0, kind: input, shape index: {}]
  %s1 = inlined_call_operand.hbm [shape: bf16[32,32], index: 1, kind: input, shape index: {}]
  %s2 = inlined_call_operand.vmem [shape: f32[1,32], index: 2, kind: input, shape index: {}]
  %s3 = inlined_call_operand.vmem [shape: f32[1,32], index: 3, kind: input, shape index: {}]
  %s4 = inlined_call_operand.vmem [shape: f32[1,32], index: 4, kind: input, shape index: {}]
  %s5 = inlined_call_operand.hbm [shape: f32[16,32], index: 5, kind: output, shape index: {}]
  %s6 = sld [smem:[#allocation0]]
  $region38: #{tpu_custom_call.1} parent=0
    _
  %s8 = ssub.s32 1, %s6
  %s9 = scalar_select 0, %s8, %s6
  $region1: #{tpu_custom_call.1} parent=0
    #allocation2 [shape = 'u8[4096]{0}', space=vmem, size = 0x1000, scoped, tag = 'input window, operand 0, single buffered']
    #allocation3 [shape = 's32[1]{0}', space=sflag, size = 0x4, scoped, tag = 'scoped memory for tpu_custom_call.1']
    #allocation4 [shape = 's32[1]{0}', space=sflag, size = 0x4, scoped, tag = 'scoped memory for tpu_custom_call.1']
    #allocation5 [shape = 'u8[8192]{0}', space=vmem, size = 0x2000, scoped, tag = 'input window, operand 1, single buffered']
    #allocation6 [shape = 's32[1]{0}', space=sflag, size = 0x4, scoped, tag = 'scoped memory for tpu_custom_call.1']
    #allocation7 [shape = 'u8[8192]{0}', space=vmem, size = 0x2000, scoped, tag = 'output window, operand 0, single buffered']
    %10 = vsyncpa [#allocation3], 0
    %11 = vsyncpa [#allocation6], 0
    %12 = vsyncpa [#allocation4], 0
    // Predicated region
    $region2: #{tpu_custom_call.1} parent=1 // pred_check
      _
    $region3: #{tpu_custom_call.1} parent=1 // pred_check_branch
      %14 = sbr.rel (0) target = $region5
    $region4: #{tpu_custom_call.1} parent=1 // pred_region
      %s16 = ssub.s32 128, 128
      %17 = vsyncadd [#allocation3], %s16
      %s18 = sshll.u32 [#allocation2], 4
      %s19 = int_to_ptr.vmem [resolvable:$true] %s18
      %24 = dma.hbm_to_vmem [thread:$0]  %s0, 128, %s19, [#allocation3], 64, 64, 4
    $region5: #{tpu_custom_call.1} parent=1 // pred_fallthru
      _
    // Predicated region
    $region6: #{tpu_custom_call.1} parent=1 // pred_check
      _
    $region7: #{tpu_custom_call.1} parent=1 // pred_check_branch
      %26 = sbr.rel (0) target = $region9
    $region8: #{tpu_custom_call.1} parent=1 // pred_region
      %s28 = ssub.s32 256, 256
      %29 = vsyncadd [#allocation6], %s28
      %s30 = sshll.u32 [#allocation5], 4
      %s31 = int_to_ptr.vmem [resolvable:$true] %s30
      %36 = dma.hbm_to_vmem [thread:$0]  %s1, 256, %s31, [#allocation6], 64, 64, 4
    $region9: #{tpu_custom_call.1} parent=1 // pred_fallthru
      _
    // Predicated region
    $region10: #{tpu_custom_call.1} parent=1 // pred_check
      _
    $region11: #{tpu_custom_call.1} parent=1 // pred_check_branch
      %38 = sbr.rel (0) target = $region13
    $region12: #{tpu_custom_call.1} parent=1 // pred_region
      _
    $region13: #{tpu_custom_call.1} parent=1 // pred_fallthru
      _
    // Predicated region
    $region14: #{tpu_custom_call.1} parent=1 // pred_check
      _
    $region15: #{tpu_custom_call.1} parent=1 // pred_check_branch
      %40 = sbr.rel (0) target = $region17
    $region16: #{tpu_custom_call.1} parent=1 // pred_region
      _
    $region17: #{tpu_custom_call.1} parent=1 // pred_fallthru
      _
    // Predicated region
    $region18: #{tpu_custom_call.1} parent=1 // pred_check
      _
    $region19: #{tpu_custom_call.1} parent=1 // pred_check_branch
      %42 = sbr.rel (0) target = $region21
    $region20: #{tpu_custom_call.1} parent=1 // pred_region
      _
    $region21: #{tpu_custom_call.1} parent=1 // pred_fallthru
      _
    // Predicated region
    $region22: #{tpu_custom_call.1} parent=1 // pred_check
      _
    $region23: #{tpu_custom_call.1} parent=1 // pred_check_branch
      %44 = sbr.rel (0) target = $region25
    $region24: #{tpu_custom_call.1} parent=1 // pred_region
      %45 = dma.done [#allocation3], 128
    $region25: #{tpu_custom_call.1} parent=1 // pred_fallthru
      _
    // Predicated region
    $region26: #{tpu_custom_call.1} parent=1 // pred_check
      _
    $region27: #{tpu_custom_call.1} parent=1 // pred_check_branch
      %47 = sbr.rel (0) target = $region29
    $region28: #{tpu_custom_call.1} parent=1 // pred_region
      %48 = dma.done [#allocation6], 256
    $region29: #{tpu_custom_call.1} parent=1 // pred_fallthru
      _
    %v50 = vld [vmem:[#allocation5] sm:$0xf]
    %v51 = vld [vmem:[#allocation5 + $0x4] sm:$0xf]
    %v52 = vld [vmem:[#allocation5 + $0x8] sm:$0xf]
    %v53 = vld [vmem:[#allocation5 + $0xc] sm:$0xf]
    %v54 = vld [vmem:[%s2] sm:$0x1]
    %v55 = vld [vmem:[%s3] sm:$0x1]
    %v56 = vld [vmem:[%s4] sm:$0x1]
    %v57 = vld [vmem:[#allocation2] sm:$0xf]
    %v59 = vlaneseq
    %v60 = vshrl.u32 %v59, 7
    %v61 = vsub.s32 0, %v60
    %v62 = vrot.slane %v54, %v61
    %v68 = vunpack.c.l.b16 %v50
    %v69 = vunpack.c.l.b16 %v51
    %v70 = vunpack.c.l.b16 %v52
    %v71 = vunpack.c.l.b16 %v53
    %v72 = vpack.c.b16 %v69, %v68
    %v73 = vpack.c.b16 %v71, %v70
    %vm76 = vcmask 261120
    %v78 = vsel %vm76, %v57, 0
    %80 = vmatprep.subr.bf16.mxu0 0
    %81 = vmatpush1.bf16.msra.mxu0 %v72
    %82 = vmatprep.subr.bf16.mxu0 0
    %83 = vmatpush1.bf16.msra.mxu0 %v73
    %84 = vmatprep.subr.bf16.mxu0 0
    %85 = vmatpush1.bf16.msra.mxu0 0
    %86 = vmatprep.subr.bf16.mxu0 0
    %87 = vmatpush1.bf16.msra.mxu0 0
    %88 = vmatprep.subr.bf16.mxu0 0
    %89 = vmatpush1.bf16.msra.mxu0 0
    %90 = vmatprep.subr.bf16.mxu0 0
    %91 = vmatpush1.bf16.msra.mxu0 0
    %92 = vmatprep.subr.bf16.mxu0 0
    %93 = vmatpush1.bf16.msra.mxu0 0
    %94 = vmatprep.subr.bf16.mxu0 0
    %95 = vmatpush1.bf16.msra.mxu0 0
    %96 = vmatprep.subr.bf16.mxu0 0
    %97 = vmatpush1.bf16.msra.mxu0 0
    %98 = vmatprep.subr.bf16.mxu0 0
    %99 = vmatpush1.bf16.msra.mxu0 0
    %100 = vmatprep.subr.bf16.mxu0 0
    %101 = vmatpush1.bf16.msra.mxu0 0
    %102 = vmatprep.subr.bf16.mxu0 0
    %103 = vmatpush1.bf16.msra.mxu0 0
    %104 = vmatprep.subr.bf16.mxu0 0
    %105 = vmatpush1.bf16.msra.mxu0 0
    %106 = vmatprep.subr.bf16.mxu0 0
    %107 = vmatpush1.bf16.msra.mxu0 0
    %108 = vmatprep.subr.bf16.mxu0 0
    %109 = vmatpush1.bf16.msra.mxu0 0
    %110 = vmatprep.subr.bf16.mxu0 0
    %111 = vmatpush1.bf16.msra.mxu0 0
    %112 = vmatprep.mubr.bf16.mxu0 0
    %113 = vmatmul.mubr.bf16.gmra.mrb[0].mxu0 %v78
    %v114 = vpop.f32.mrb[0].mxu0
    %v115 = vadd.f32 %v62, %v114
    %v116 = vpop.f32.mrb[0].mxu0
    %v117 = vpop.f32.mrb[0].mxu0
    %v118 = vpop.f32.mrb[0].mxu0
    %119 = vdwg.mxu0
    %v120 = vmax.f32 %v115, 0.0
    %v121 = vsel %vm76, %v120, 0.0
    %122 = vadd.xlane.f32.xlu0 %v121
    %v123 = vpop.xlane.xlu0 %122
    %v124 = vrcp.pop 32.0
    %v125 = vmul.f32 %v123, %v124
    %v126 = vmul.f32 %v120, %v120
    %v127 = vsel %vm76, %v126, 0.0
    %128 = vadd.xlane.f32.xlu0 %v127
    %v129 = vpop.xlane.xlu0 %128
    %v130 = vmul.f32 %v129, %v124
    %v131 = vmul.f32 %v125, %v125
    %v132 = vsub.f32 %v130, %v131
    %v133 = vmax.f32 %v132, 0.0
    %v134 = vsub.f32 %v120, %v125
    %v135 = vadd.f32 %v133, 1e-12
    %v136 = vrsqrt.pop %v135
    %v137 = vmul.f32 %v134, %v136
    %v139 = vlaneseq
    %v140 = vshrl.u32 %v139, 7
    %v141 = vsub.s32 0, %v140
    %v142 = vrot.slane %v55, %v141
    %v144 = vmul.f32 %v142, %v137
    %v146 = vlaneseq
    %v147 = vshrl.u32 %v146, 7
    %v148 = vsub.s32 0, %v147
    %v149 = vrot.slane %v56, %v148
    %v151 = vadd.f32 %v144, %v149
    %152 = vst.msk [vmem:[#allocation7] sm:$0xff] %vm76, %v151
    %v153 = vld [vmem:[#allocation2 + $0x4] sm:$0xf]
    %v155 = vsel %vm76, %v153, 0
    %157 = vmatprep.subr.bf16.mxu0 0
    %158 = vmatpush1.bf16.msra.mxu0 %v72
    %159 = vmatprep.subr.bf16.mxu0 0
    %160 = vmatpush1.bf16.msra.mxu0 %v73
    %161 = vmatprep.subr.bf16.mxu0 0
    %162 = vmatpush1.bf16.msra.mxu0 0
    %163 = vmatprep.subr.bf16.mxu0 0
    %164 = vmatpush1.bf16.msra.mxu0 0
    %165 = vmatprep.subr.bf16.mxu0 0
    %166 = vmatpush1.bf16.msra.mxu0 0
    %167 = vmatprep.subr.bf16.mxu0 0
    %168 = vmatpush1.bf16.msra.mxu0 0
    %169 = vmatprep.subr.bf16.mxu0 0
    %170 = vmatpush1.bf16.msra.mxu0 0
    %171 = vmatprep.subr.bf16.mxu0 0
    %172 = vmatpush1.bf16.msra.mxu0 0
    %173 = vmatprep.subr.bf16.mxu0 0
    %174 = vmatpush1.bf16.msra.mxu0 0
    %175 = vmatprep.subr.bf16.mxu0 0
    %176 = vmatpush1.bf16.msra.mxu0 0
    %177 = vmatprep.subr.bf16.mxu0 0
    %178 = vmatpush1.bf16.msra.mxu0 0
    %179 = vmatprep.subr.bf16.mxu0 0
    %180 = vmatpush1.bf16.msra.mxu0 0
    %181 = vmatprep.subr.bf16.mxu0 0
    %182 = vmatpush1.bf16.msra.mxu0 0
    %183 = vmatprep.subr.bf16.mxu0 0
    %184 = vmatpush1.bf16.msra.mxu0 0
    %185 = vmatprep.subr.bf16.mxu0 0
    %186 = vmatpush1.bf16.msra.mxu0 0
    %187 = vmatprep.subr.bf16.mxu0 0
    %188 = vmatpush1.bf16.msra.mxu0 0
    %189 = vmatprep.mubr.bf16.mxu0 0
    %190 = vmatmul.mubr.bf16.gmra.mrb[0].mxu0 %v155
    %v191 = vpop.f32.mrb[0].mxu0
    %v192 = vadd.f32 %v62, %v191
    %v193 = vpop.f32.mrb[0].mxu0
    %v194 = vpop.f32.mrb[0].mxu0
    %v195 = vpop.f32.mrb[0].mxu0
    %196 = vdwg.mxu0
    %v197 = vmax.f32 %v192, 0.0
    %v198 = vsel %vm76, %v197, 0.0
    %199 = vadd.xlane.f32.xlu0 %v198
    %v200 = vpop.xlane.xlu0 %199
    %v201 = vmul.f32 %v200, %v124
    %v202 = vmul.f32 %v197, %v197
    %v203 = vsel %vm76, %v202, 0.0
    %204 = vadd.xlane.f32.xlu0 %v203
    %v205 = vpop.xlane.xlu0 %204
    %v206 = vmul.f32 %v205, %v124
    %v207 = vmul.f32 %v201, %v201
    %v208 = vsub.f32 %v206, %v207
    %v209 = vmax.f32 %v208, 0.0
    %v210 = vsub.f32 %v197, %v201
    %v211 = vadd.f32 %v209, 1e-12
    %v212 = vrsqrt.pop %v211
    %v213 = vmul.f32 %v210, %v212
    %v214 = vmul.f32 %v142, %v213
    %v215 = vadd.f32 %v214, %v149
    %216 = vst.msk [vmem:[#allocation7 + $0x8] sm:$0xff] %vm76, %v215
    // Predicated region
    $region30: #{tpu_custom_call.1} parent=1 // pred_check
      _
    $region31: #{tpu_custom_call.1} parent=1 // pred_check_branch
      %218 = sbr.rel (0) target = $region33
    $region32: #{tpu_custom_call.1} parent=1 // pred_region
      %s220 = ssub.s32 256, 256
      %221 = vsyncadd [#allocation4], %s220
      %s222 = sshll.u32 [#allocation7], 4
      %s223 = int_to_ptr.vmem [resolvable:$true] %s222
      %228 = dma.vmem_to_hbm [thread:$0]  %s223, 256, %s5, [#allocation4], 128, 128, 8
    $region33: #{tpu_custom_call.1} parent=1 // pred_fallthru
      _
    // Predicated region
    $region34: #{tpu_custom_call.1} parent=1 // pred_check
      _
    $region35: #{tpu_custom_call.1} parent=1 // pred_check_branch
      %230 = sbr.rel (0) target = $region37
    $region36: #{tpu_custom_call.1} parent=1 // pred_region
      %231 = dma.done [#allocation4], 256
    $region37: #{tpu_custom_call.1} parent=1 // pred_fallthru
      _
    %232 = vsyncpa [#allocation3], 1
    %233 = vsyncpa [#allocation6], 1
    %234 = vsyncpa [#allocation4], 1

// kernel: tpu_custom_call.1
$region0: #{tpu_custom_call.1}
  #allocation0 [shape = 'u32[]', space=smem, size = 0x4, offset = 0x4, fixed_abs, tag = 'smem constant byte address 0x4 - core index']
  #allocation1 [shape = 'u32[144,128]{1,0:T(1,128)}', space=vmem, size = 0x12000, scoped, tag = 'internal scratch']
  %s0 = inlined_call_operand.hbm [shape: bf16[16,32], index: 0, kind: input, shape index: {}]
  %s1 = inlined_call_operand.hbm [shape: bf16[32,32], index: 1, kind: input, shape index: {}]
  %s2 = inlined_call_operand.vmem [shape: f32[1,32], index: 2, kind: input, shape index: {}]
  %s3 = inlined_call_operand.vmem [shape: f32[1,32], index: 3, kind: input, shape index: {}]
  %s4 = inlined_call_operand.vmem [shape: f32[1,32], index: 4, kind: input, shape index: {}]
  %s5 = inlined_call_operand.hbm [shape: f32[16,32], index: 5, kind: output, shape index: {}]
  %s6 = sld [smem:[#allocation0]]
  $region38: #{tpu_custom_call.1} parent=0
    _
  %s8 = ssub.s32 1, %s6
  %s9 = scalar_select 0, %s8, %s6
  $region1: #{tpu_custom_call.1} parent=0
    #allocation2 [shape = 'u8[4096]{0}', space=vmem, size = 0x1000, scoped, tag = 'input window, operand 0, single buffered']
    #allocation3 [shape = 's32[1]{0}', space=sflag, size = 0x4, scoped, tag = 'scoped memory for tpu_custom_call.1']
    #allocation4 [shape = 's32[1]{0}', space=sflag, size = 0x4, scoped, tag = 'scoped memory for tpu_custom_call.1']
    #allocation5 [shape = 'u8[8192]{0}', space=vmem, size = 0x2000, scoped, tag = 'input window, operand 1, single buffered']
    #allocation6 [shape = 's32[1]{0}', space=sflag, size = 0x4, scoped, tag = 'scoped memory for tpu_custom_call.1']
    #allocation7 [shape = 'u8[8192]{0}', space=vmem, size = 0x2000, scoped, tag = 'output window, operand 0, single buffered']
    %10 = vsyncpa [#allocation3], 0
    %11 = vsyncpa [#allocation6], 0
    %12 = vsyncpa [#allocation4], 0
    // Predicated region
    $region2: #{tpu_custom_call.1} parent=1 // pred_check
      _
    $region3: #{tpu_custom_call.1} parent=1 // pred_check_branch
      %14 = sbr.rel (0) target = $region5
    $region4: #{tpu_custom_call.1} parent=1 // pred_region
      %s16 = ssub.s32 128, 128
      %17 = vsyncadd [#allocation3], %s16
      %s18 = sshll.u32 [#allocation2], 4
      %s19 = int_to_ptr.vmem [resolvable:$true] %s18
      %24 = dma.hbm_to_vmem [thread:$0]  %s0, 128, %s19, [#allocation3], 64, 64, 4
    $region5: #{tpu_custom_call.1} parent=1 // pred_fallthru
      _
    // Predicated region
    $region6: #{tpu_custom_call.1} parent=1 // pred_check
      _
    $region7: #{tpu_custom_call.1} parent=1 // pred_check_branch
      %26 = sbr.rel (0) target = $region9
    $region8: #{tpu_custom_call.1} parent=1 // pred_region
      %s28 = ssub.s32 256, 256
      %29 = vsyncadd [#allocation6], %s28
      %s30 = sshll.u32 [#allocation5], 4
      %s31 = int_to_ptr.vmem [resolvable:$true] %s30
      %36 = dma.hbm_to_vmem [thread:$0]  %s1, 256, %s31, [#allocation6], 64, 64, 4
    $region9: #{tpu_custom_call.1} parent=1 // pred_fallthru
      _
    // Predicated region
    $region10: #{tpu_custom_call.1} parent=1 // pred_check
      _
    $region11: #{tpu_custom_call.1} parent=1 // pred_check_branch
      %38 = sbr.rel (0) target = $region13
    $region12: #{tpu_custom_call.1} parent=1 // pred_region
      _
    $region13: #{tpu_custom_call.1} parent=1 // pred_fallthru
      _
    // Predicated region
    $region14: #{tpu_custom_call.1} parent=1 // pred_check
      _
    $region15: #{tpu_custom_call.1} parent=1 // pred_check_branch
      %40 = sbr.rel (0) target = $region17
    $region16: #{tpu_custom_call.1} parent=1 // pred_region
      _
    $region17: #{tpu_custom_call.1} parent=1 // pred_fallthru
      _
    // Predicated region
    $region18: #{tpu_custom_call.1} parent=1 // pred_check
      _
    $region19: #{tpu_custom_call.1} parent=1 // pred_check_branch
      %42 = sbr.rel (0) target = $region21
    $region20: #{tpu_custom_call.1} parent=1 // pred_region
      _
    $region21: #{tpu_custom_call.1} parent=1 // pred_fallthru
      _
    // Predicated region
    $region22: #{tpu_custom_call.1} parent=1 // pred_check
      _
    $region23: #{tpu_custom_call.1} parent=1 // pred_check_branch
      %44 = sbr.rel (0) target = $region25
    $region24: #{tpu_custom_call.1} parent=1 // pred_region
      %45 = dma.done [#allocation3], 128
    $region25: #{tpu_custom_call.1} parent=1 // pred_fallthru
      _
    // Predicated region
    $region26: #{tpu_custom_call.1} parent=1 // pred_check
      _
    $region27: #{tpu_custom_call.1} parent=1 // pred_check_branch
      %47 = sbr.rel (0) target = $region29
    $region28: #{tpu_custom_call.1} parent=1 // pred_region
      %48 = dma.done [#allocation6], 256
    $region29: #{tpu_custom_call.1} parent=1 // pred_fallthru
      _
    %v50 = vld [vmem:[#allocation5] sm:$0xf]
    %v51 = vld [vmem:[#allocation5 + $0x4] sm:$0xf]
    %v52 = vld [vmem:[#allocation5 + $0x8] sm:$0xf]
    %v53 = vld [vmem:[#allocation5 + $0xc] sm:$0xf]
    %v54 = vld [vmem:[%s2] sm:$0x1]
    %v55 = vld [vmem:[%s3] sm:$0x1]
    %v56 = vld [vmem:[%s4] sm:$0x1]
    %v57 = vld [vmem:[#allocation2] sm:$0xf]
    %v59 = vlaneseq
    %v60 = vshrl.u32 %v59, 7
    %v61 = vsub.s32 0, %v60
    %v62 = vrot.slane %v54, %v61
    %v68 = vunpack.c.l.b16 %v50
    %v69 = vunpack.c.l.b16 %v51
    %v70 = vunpack.c.l.b16 %v52
    %v71 = vunpack.c.l.b16 %v53
    %v72 = vpack.c.b16 %v69, %v68
    %v73 = vpack.c.b16 %v71, %v70
    %vm76 = vcmask 261120
    %v78 = vsel %vm76, %v57, 0
    %80 = vmatprep.subr.bf16.mxu0 0
    %81 = vmatpush1.bf16.msra.mxu0 %v72
    %82 = vmatprep.subr.bf16.mxu0 0
    %83 = vmatpush1.bf16.msra.mxu0 %v73
    %84 = vmatprep.subr.bf16.mxu0 0
    %85 = vmatpush1.bf16.msra.mxu0 0
    %86 = vmatprep.subr.bf16.mxu0 0
    %87 = vmatpush1.bf16.msra.mxu0 0
    %88 = vmatprep.subr.bf16.mxu0 0
    %89 = vmatpush1.bf16.msra.mxu0 0
    %90 = vmatprep.subr.bf16.mxu0 0
    %91 = vmatpush1.bf16.msra.mxu0 0
    %92 = vmatprep.subr.bf16.mxu0 0
    %93 = vmatpush1.bf16.msra.mxu0 0
    %94 = vmatprep.subr.bf16.mxu0 0
    %95 = vmatpush1.bf16.msra.mxu0 0
    %96 = vmatprep.subr.bf16.mxu0 0
    %97 = vmatpush1.bf16.msra.mxu0 0
    %98 = vmatprep.subr.bf16.mxu0 0
    %99 = vmatpush1.bf16.msra.mxu0 0
    %100 = vmatprep.subr.bf16.mxu0 0
    %101 = vmatpush1.bf16.msra.mxu0 0
    %102 = vmatprep.subr.bf16.mxu0 0
    %103 = vmatpush1.bf16.msra.mxu0 0
    %104 = vmatprep.subr.bf16.mxu0 0
    %105 = vmatpush1.bf16.msra.mxu0 0
    %106 = vmatprep.subr.bf16.mxu0 0
    %107 = vmatpush1.bf16.msra.mxu0 0
    %108 = vmatprep.subr.bf16.mxu0 0
    %109 = vmatpush1.bf16.msra.mxu0 0
    %110 = vmatprep.subr.bf16.mxu0 0
    %111 = vmatpush1.bf16.msra.mxu0 0
    %112 = vmatprep.mubr.bf16.mxu0 0
    %113 = vmatmul.mubr.bf16.gmra.mrb[0].mxu0 %v78
    %v114 = vpop.f32.mrb[0].mxu0
    %v115 = vadd.f32 %v62, %v114
    %v116 = vpop.f32.mrb[0].mxu0
    %v117 = vpop.f32.mrb[0].mxu0
    %v118 = vpop.f32.mrb[0].mxu0
    %119 = vdwg.mxu0
    %v120 = vmax.f32 %v115, 0.0
    %v121 = vsel %vm76, %v120, 0.0
    %122 = vadd.xlane.f32.xlu0 %v121
    %v123 = vpop.xlane.xlu0 %122
    %v124 = vrcp.pop 32.0
    %v125 = vmul.f32 %v123, %v124
    %v126 = vmul.f32 %v120, %v120
    %v127 = vsel %vm76, %v126, 0.0
    %128 = vadd.xlane.f32.xlu0 %v127
    %v129 = vpop.xlane.xlu0 %128
    %v130 = vmul.f32 %v129, %v124
    %v131 = vmul.f32 %v125, %v125
    %v132 = vsub.f32 %v130, %v131
    %v133 = vmax.f32 %v132, 0.0
    %v134 = vsub.f32 %v120, %v125
    %v135 = vadd.f32 %v133, 1e-12
    %v136 = vrsqrt.pop %v135
    %v137 = vmul.f32 %v134, %v136
    %v139 = vlaneseq
    %v140 = vshrl.u32 %v139, 7
    %v141 = vsub.s32 0, %v140
    %v142 = vrot.slane %v55, %v141
    %v144 = vmul.f32 %v142, %v137
    %v146 = vlaneseq
    %v147 = vshrl.u32 %v146, 7
    %v148 = vsub.s32 0, %v147
    %v149 = vrot.slane %v56, %v148
    %v151 = vadd.f32 %v144, %v149
    %152 = vst.msk [vmem:[#allocation7] sm:$0xff] %vm76, %v151
    %v153 = vld [vmem:[#allocation2 + $0x4] sm:$0xf]
    %v155 = vsel %vm76, %v153, 0
    %157 = vmatprep.subr.bf16.mxu0 0
    %158 = vmatpush1.bf16.msra.mxu0 %v72
    %159 = vmatprep.subr.bf16.mxu0 0
    %160 = vmatpush1.bf16.msra.mxu0 %v73
    %161 = vmatprep.subr.bf16.mxu0 0
    %162 = vmatpush1.bf16.msra.mxu0 0
    %163 = vmatprep.subr.bf16.mxu0 0
    %164 = vmatpush1.bf16.msra.mxu0 0
    %165 = vmatprep.subr.bf16.mxu0 0
    %166 = vmatpush1.bf16.msra.mxu0 0
    %167 = vmatprep.subr.bf16.mxu0 0
    %168 = vmatpush1.bf16.msra.mxu0 0
    %169 = vmatprep.subr.bf16.mxu0 0
    %170 = vmatpush1.bf16.msra.mxu0 0
    %171 = vmatprep.subr.bf16.mxu0 0
    %172 = vmatpush1.bf16.msra.mxu0 0
    %173 = vmatprep.subr.bf16.mxu0 0
    %174 = vmatpush1.bf16.msra.mxu0 0
    %175 = vmatprep.subr.bf16.mxu0 0
    %176 = vmatpush1.bf16.msra.mxu0 0
    %177 = vmatprep.subr.bf16.mxu0 0
    %178 = vmatpush1.bf16.msra.mxu0 0
    %179 = vmatprep.subr.bf16.mxu0 0
    %180 = vmatpush1.bf16.msra.mxu0 0
    %181 = vmatprep.subr.bf16.mxu0 0
    %182 = vmatpush1.bf16.msra.mxu0 0
    %183 = vmatprep.subr.bf16.mxu0 0
    %184 = vmatpush1.bf16.msra.mxu0 0
    %185 = vmatprep.subr.bf16.mxu0 0
    %186 = vmatpush1.bf16.msra.mxu0 0
    %187 = vmatprep.subr.bf16.mxu0 0
    %188 = vmatpush1.bf16.msra.mxu0 0
    %189 = vmatprep.mubr.bf16.mxu0 0
    %190 = vmatmul.mubr.bf16.gmra.mrb[0].mxu0 %v155
    %v191 = vpop.f32.mrb[0].mxu0
    %v192 = vadd.f32 %v62, %v191
    %v193 = vpop.f32.mrb[0].mxu0
    %v194 = vpop.f32.mrb[0].mxu0
    %v195 = vpop.f32.mrb[0].mxu0
    %196 = vdwg.mxu0
    %v197 = vmax.f32 %v192, 0.0
    %v198 = vsel %vm76, %v197, 0.0
    %199 = vadd.xlane.f32.xlu0 %v198
    %v200 = vpop.xlane.xlu0 %199
    %v201 = vmul.f32 %v200, %v124
    %v202 = vmul.f32 %v197, %v197
    %v203 = vsel %vm76, %v202, 0.0
    %204 = vadd.xlane.f32.xlu0 %v203
    %v205 = vpop.xlane.xlu0 %204
    %v206 = vmul.f32 %v205, %v124
    %v207 = vmul.f32 %v201, %v201
    %v208 = vsub.f32 %v206, %v207
    %v209 = vmax.f32 %v208, 0.0
    %v210 = vsub.f32 %v197, %v201
    %v211 = vadd.f32 %v209, 1e-12
    %v212 = vrsqrt.pop %v211
    %v213 = vmul.f32 %v210, %v212
    %v214 = vmul.f32 %v142, %v213
    %v215 = vadd.f32 %v214, %v149
    %216 = vst.msk [vmem:[#allocation7 + $0x8] sm:$0xff] %vm76, %v215
    // Predicated region
    $region30: #{tpu_custom_call.1} parent=1 // pred_check
      _
    $region31: #{tpu_custom_call.1} parent=1 // pred_check_branch
      %218 = sbr.rel (0) target = $region33
    $region32: #{tpu_custom_call.1} parent=1 // pred_region
      %s220 = ssub.s32 256, 256
      %221 = vsyncadd [#allocation4], %s220
      %s222 = sshll.u32 [#allocation7], 4
      %s223 = int_to_ptr.vmem [resolvable:$true] %s222
      %228 = dma.vmem_to_hbm [thread:$0]  %s223, 256, %s5, [#allocation4], 128, 128, 8
    $region33: #{tpu_custom_call.1} parent=1 // pred_fallthru
      _
    // Predicated region
    $region34: #{tpu_custom_call.1} parent=1 // pred_check
      _
    $region35: #{tpu_custom_call.1} parent=1 // pred_check_branch
      %230 = sbr.rel (0) target = $region37
    $region36: #{tpu_custom_call.1} parent=1 // pred_region
      %231 = dma.done [#allocation4], 256
    $region37: #{tpu_custom_call.1} parent=1 // pred_fallthru
      _
    %232 = vsyncpa [#allocation3], 1
    %233 = vsyncpa [#allocation6], 1
    %234 = vsyncpa [#allocation4], 1

</llo_original>
